<compile_context>
chip_gen: v7x
topology: tpu7x:2x2x1
jax: 0.10.0
libtpu: 0.0.40
codegen_flags: <defaults>
</compile_context>

<pallas_src>
import functools

import jax
import jax.numpy as jnp
import numpy as np
from jax import lax
from jax.experimental import pallas as pl
from jax.experimental.pallas import tpu as pltpu

NUM_OBJECTS = 7  # len(vocab['object_idx_to_name'])


# ------------------------------ small helpers ------------------------------

def _round_up(x, m):
    return (x + m - 1) // m * m


def _pick_tm(m, cap=2048):
    """Pixel-tile size: multiple of 128 lanes, capped to keep VMEM small."""
    return min(cap, _round_up(m, 128))


def _im2col_T(x_cnhw, K, stride, pad):
    """Patch extraction in channels-major layout (layout glue, plain JAX).

    x_cnhw: (C, N, H, W) -> patchesT: (K*K*C, N*Ho*Wo), row order (kh,kw,c)
    which matches w.reshape(K*K*C, Cout) for HWIO weights.
    """
    # TODO(synk): pull the kh/kw patch extraction into the GEMM kernel (halo
    # DMA + strided pl.ds views) to avoid materializing the 9x im2col matrix
    # in HBM; also fuse conv1 into the tail kernel to drop the a1 round trip.
    C, N, H, W = x_cnhw.shape
    xp = jnp.pad(x_cnhw, ((0, 0), (0, 0), (pad, pad), (pad, pad)))
    Ho = (H + 2 * pad - K) // stride + 1
    Wo = (W + 2 * pad - K) // stride + 1
    cols = []
    for kh in range(K):
        for kw in range(K):
            cols.append(xp[:, :, kh:kh + (Ho - 1) * stride + 1:stride,
                                 kw:kw + (Wo - 1) * stride + 1:stride])
    p = jnp.stack(cols, axis=0)                # (K*K, C, N, Ho, Wo)
    p = p.reshape(K * K * C, N * Ho * Wo)      # row = (kh*K+kw)*C + c
    return p, (Ho, Wo)


# ----------------------------- Pallas kernels ------------------------------

def _conv_gemm_kernel(w_ref, b_ref, p_ref, o_ref):
    """o = relu(w @ p + b); lane axis = pixels (lane-dense stores)."""
    p = p_ref[...].astype(jnp.float32)          # bf16 storage -> f32 compute
    acc = jnp.dot(w_ref[...], p, preferred_element_type=jnp.float32)
    acc = jnp.maximum(acc + b_ref[...], 0.0)
    o_ref[...] = acc.astype(o_ref.dtype)


def conv_gemm_T(patchesT, wT, b):
    """relu(conv) as a gridded GEMM in (Cout, pixels) layout.

    patchesT: (K, M) bf16, wT: (Cout, K) f32, b: (Cout, 1) f32
    returns:  (Cout, Mp) bf16 with Mp = M rounded up to the tile size.
    """
    Cout, K = wT.shape
    Kp, M = patchesT.shape
    assert K == Kp
    TM = _pick_tm(M)
    Mp = _round_up(M, TM)
    patchesT = jnp.pad(patchesT, ((0, 0), (0, Mp - M)))
    flops = 2 * Cout * K * Mp
    bytes_accessed = patchesT.size * 2 + wT.size * 4 + b.size * 4 + Cout * Mp * 2
    return pl.pallas_call(
        _conv_gemm_kernel,
        out_shape=jax.ShapeDtypeStruct((Cout, Mp), jnp.bfloat16),
        grid=(Mp // TM,),
        in_specs=[pl.BlockSpec((Cout, K), lambda i: (0, 0)),
                  pl.BlockSpec((Cout, 1), lambda i: (0, 0)),
                  pl.BlockSpec((K, TM), lambda i: (0, i))],
        out_specs=pl.BlockSpec((Cout, TM), lambda i: (0, i)),
        compiler_params=pltpu.CompilerParams(dimension_semantics=("parallel",)),
        cost_estimate=pl.CostEstimate(flops=int(flops), transcendentals=0,
                                      bytes_accessed=int(bytes_accessed)),
    )(wT, b, patchesT)


def _conv_tail_kernel(HW2, w2_ref, b2_ref, wR_ref, bR_ref, wO_ref, bO_ref,
                      oh_ref, p_ref, real_ref, loss_ref, acc_ref):
    """conv2 GEMM + ReLU + in-kernel GAP-accumulate; last step: heads + CE."""
    i = pl.program_id(0)
    TM = p_ref.shape[1]
    N = acc_ref.shape[1]

    @pl.when(i == 0)
    def _init():
        acc_ref[...] = jnp.zeros_like(acc_ref)

    p = p_ref[...].astype(jnp.float32)
    r = jnp.dot(w2_ref[...], p, preferred_element_type=jnp.float32)   # (C2, TM)
    r = jnp.maximum(r + b2_ref[...], 0.0)

    # Per-sample pooling mask generated in-kernel (no HBM pooling matrix).
    # Pixel axis is n-major, so sample n owns pixels [n*HW2, (n+1)*HW2).
    # Padded columns (pix >= N*HW2) match no sample -> excluded exactly.
    pix = i * TM + lax.broadcasted_iota(jnp.int32, (TM, N), 0)
    lo = lax.broadcasted_iota(jnp.int32, (TM, N), 1) * HW2
    mask = ((pix >= lo) & (pix < lo + HW2)).astype(jnp.float32)       # (TM, N)
    acc_ref[...] += jnp.dot(r, mask, preferred_element_type=jnp.float32)

    @pl.when(i == pl.num_programs(0) - 1)
    def _finish():
        vec = acc_ref[...] * (1.0 / HW2)                              # (C2, N)
        real_logits = jnp.dot(wR_ref[...], vec,
                              preferred_element_type=jnp.float32) + bR_ref[...]
        obj_logits = jnp.dot(wO_ref[...], vec,
                             preferred_element_type=jnp.float32) + bO_ref[...]
        real_ref[...] = real_logits                                   # (1, N)
        m = jnp.max(obj_logits, axis=0, keepdims=True)
        lse = jnp.log(jnp.sum(jnp.exp(obj_logits - m), axis=0,
                              keepdims=True)) + m
        logp = obj_logits - lse                                       # (n_cls, N)
        nll = -jnp.sum(oh_ref[...] * logp, axis=0, keepdims=True)     # (1, N)
        loss_ref[...] = jnp.mean(nll, axis=1, keepdims=True)          # (1, 1)


def conv2_tail_fused(patchesT, w2T, b2, wRT, bR, wOT, bO, onehotT, HW2, TM):
    """Fused conv2 + GAP + (collapsed) heads + cross-entropy.
    Returns (realT (1,N) f32, loss (1,1) f32)."""
    C2, K = w2T.shape
    Kp, Mp = patchesT.shape
    assert K == Kp
    n_cls, N = onehotT.shape
    # TODO(synk): on v7x, add a leading "parallel" sample-block grid axis (each
    # block owning its own acc slice) to use the second TensorCore.
    kernel = functools.partial(_conv_tail_kernel, HW2)
    flops = 2 * C2 * K * Mp + 2 * C2 * N * Mp + 2 * (1 + n_cls) * C2 * N
    bytes_accessed = (patchesT.size * 2 + w2T.size * 4 + b2.size * 4 +
                      (wRT.size + wOT.size + onehotT.size) * 4 + N * 8)
    return pl.pallas_call(
        kernel,
        out_shape=(jax.ShapeDtypeStruct((1, N), jnp.float32),
                   jax.ShapeDtypeStruct((1, 1), jnp.float32)),
        grid=(Mp // TM,),
        in_specs=[pl.BlockSpec((C2, K), lambda i: (0, 0)),
                  pl.BlockSpec((C2, 1), lambda i: (0, 0)),
                  pl.BlockSpec((1, C2), lambda i: (0, 0)),
                  pl.BlockSpec((1, 1), lambda i: (0, 0)),
                  pl.BlockSpec((n_cls, C2), lambda i: (0, 0)),
                  pl.BlockSpec((n_cls, 1), lambda i: (0, 0)),
                  pl.BlockSpec((n_cls, N), lambda i: (0, 0)),
                  pl.BlockSpec((K, TM), lambda i: (0, i))],
        out_specs=(pl.BlockSpec((1, N), lambda i: (0, 0)),
                   pl.BlockSpec((1, 1), lambda i: (0, 0))),
        scratch_shapes=[pltpu.VMEM((C2, N), jnp.float32)],
        compiler_params=pltpu.CompilerParams(dimension_semantics=("arbitrary",)),
        cost_estimate=pl.CostEstimate(flops=int(flops),
                                      transcendentals=int((n_cls + 1) * N),
                                      bytes_accessed=int(bytes_accessed)),
    )(w2T, b2, wRT, bR, wOT, bO, onehotT, patchesT)


# ------------------------------ forward pass -------------------------------

def ac_discriminator_forward(params, x_nchw, y):
    """Returns (real_scores: (N,1) f32, ac_loss: scalar f32)."""
    if x_nchw.ndim == 3:                         # mirror `x = x[:, None]`
        x_nchw = x_nchw[:, None]
    N = x_nchw.shape[0]

    # channels-major layout (C, N, H, W); bf16 storage for the big HBM streams
    x = jnp.transpose(x_nchw, (1, 0, 2, 3)).astype(jnp.bfloat16)

    # --- conv1: 3 -> 8, k3 s2 p1, ReLU (Pallas GEMM, lane-dense output) ---
    p1, (H1, W1) = _im2col_T(x, K=3, stride=2, pad=1)               # (27, M1)
    w1T = params['c1_w'].reshape(-1, 8).T.astype(jnp.float32)       # (8, 27)
    b1 = params['c1_b'].reshape(-1, 1).astype(jnp.float32)
    M1 = N * H1 * W1
    a1 = conv_gemm_T(p1, w1T, b1)                                   # (8, M1p) bf16
    a1 = a1[:, :M1].reshape(8, N, H1, W1)

    # --- conv2 patches ---
    p2, (H2, W2) = _im2col_T(a1, K=3, stride=2, pad=1)              # (72, M2) bf16
    M2 = N * H2 * W2
    HW2 = H2 * W2
    w2T = params['c2_w'].reshape(-1, 16).T.astype(jnp.float32)      # (16, 72)
    b2 = params['c2_b'].reshape(-1, 1).astype(jnp.float32)

    # --- collapse fc(16->1024) -> {real(1024->1), obj(1024->7)} (exact) ---
    head_w = jnp.concatenate([params['real_w'], params['obj_w']], axis=1)  # (1024, 8)
    head_b = jnp.concatenate([params['real_b'], params['obj_b']])          # (8,)
    wH = params['fc_w'] @ head_w                                           # (16, 8)
    bH = params['fc_b'] @ head_w + head_b                                  # (8,)
    wRT = wH[:, 0:1].T.astype(jnp.float32)                                 # (1, 16)
    bR = bH[0:1].reshape(1, 1).astype(jnp.float32)
    wOT = wH[:, 1:].T.astype(jnp.float32)                                  # (7, 16)
    bO = bH[1:].reshape(NUM_OBJECTS, 1).astype(jnp.float32)

    onehotT = jax.nn.one_hot(y, NUM_OBJECTS, dtype=jnp.float32).T          # (7, N)

    # --- pad pixel axis to the tile size; pooling mask is built in-kernel ---
    TM = _pick_tm(M2)
    M2p = _round_up(M2, TM)
    p2 = jnp.pad(p2, ((0, 0), (0, M2p - M2)))

    realT, loss = conv2_tail_fused(p2, w2T, b2, wRT, bR, wOT, bO,
                                   onehotT, HW2, TM)
    real_scores = realT.T                                                  # (N, 1)
    return real_scores, loss[0, 0]


# ------------------------------- reference ---------------------------------

def reference_forward(params, x_nchw, y):
    """Pure-JAX f32 reference for correctness check."""
    x = jnp.transpose(x_nchw, (0, 2, 3, 1))

    def conv(x, w, b, stride, pad):
        out = jax.lax.conv_general_dilated(
            x, w, (stride, stride), [(pad, pad), (pad, pad)],
            dimension_numbers=('NHWC', 'HWIO', 'NHWC'))
        return jax.nn.relu(out + b)

    x = conv(x, params['c1_w'], params['c1_b'], 2, 1)
    x = conv(x, params['c2_w'], params['c2_b'], 2, 1)
    vec = jnp.mean(x, axis=(1, 2))
    vecs = vec @ params['fc_w'] + params['fc_b']
    real = vecs @ params['real_w'] + params['real_b']
    obj = vecs @ params['obj_w'] + params['obj_b']
    logp = jax.nn.log_softmax(obj, axis=-1)
    loss = -jnp.mean(jnp.take_along_axis(logp, y[:, None], axis=-1))
    return real, loss


def init_params(key):
    ks = jax.random.split(key, 10)

    def p(k, shape, fan_in):
        return jax.random.normal(k, shape, jnp.float32) / np.sqrt(fan_in)

    return {
        'c1_w': p(ks[0], (3, 3, 3, 8), 3 * 3 * 3),
        'c1_b': p(ks[1], (8,), 27),
        'c2_w': p(ks[2], (3, 3, 8, 16), 3 * 3 * 8),
        'c2_b': p(ks[3], (16,), 72),
        'fc_w': p(ks[4], (16, 1024), 16),
        'fc_b': p(ks[5], (1024,), 16),
        'real_w': p(ks[6], (1024, 1), 1024),
        'real_b': p(ks[7], (1,), 1024),
        'obj_w': p(ks[8], (1024, NUM_OBJECTS), 1024),
        'obj_b': p(ks[9], (NUM_OBJECTS,), 1024),
    }


if __name__ == "__main__":
    key = jax.random.PRNGKey(0)
    kp, kx, ky = jax.random.split(key, 3)
    params = init_params(kp)

    x = jax.random.normal(kx, (2, 3, 16, 16), jnp.float32)   # NCHW like PyTorch
    y = jax.random.randint(ky, (2,), 0, NUM_OBJECTS)

    fwd = jax.jit(ac_discriminator_forward)
    real_scores, ac_loss = fwd(params, x, y)
    jax.block_until_ready((real_scores, ac_loss))

    ref_scores, ref_loss = reference_forward(params, x, y)
    np.testing.assert_allclose(np.asarray(real_scores), np.asarray(ref_scores),
                               rtol=2e-2, atol=2e-2)
    np.testing.assert_allclose(float(ac_loss), float(ref_loss),
                               rtol=2e-2, atol=2e-2)
    print("KERNEL_OK")
</pallas_src>

<mosaic_0001>
module attributes {stable_mosaic.version = 11 : i64} {
  func.func @_conv_gemm_kernel(%arg0: i32, %arg1: memref<8x27xf32, #tpu.memory_space<vmem>>, %arg2: memref<8x1xf32, #tpu.memory_space<vmem>>, %arg3: memref<27x128xbf16, #tpu.memory_space<vmem>>, %arg4: memref<8x128xbf16, #tpu.memory_space<vmem>>) attributes {dimension_semantics = [#tpu.dimension_semantics<parallel>], iteration_bounds = array<i64: 1>, scalar_prefetch = 0 : i64, scratch_operands = 0 : i64, tpu.core_type = #tpu.core_type<tc>, window_params = [{pipeline_mode = #tpu.pipeline_mode<synchronous>, transform_indices = @transform_0, window_bounds = array<i64: 8, 27>}, {pipeline_mode = #tpu.pipeline_mode<synchronous>, transform_indices = @transform_1, window_bounds = array<i64: 8, 1>}, {transform_indices = @transform_2, window_bounds = array<i64: 27, 128>}, {transform_indices = @transform_3, window_bounds = array<i64: 8, 128>}]} {
    %c0 = arith.constant 0 : index
    %c0_0 = arith.constant 0 : index
    %0 = vector.load %arg3[%c0, %c0_0] : memref<27x128xbf16, #tpu.memory_space<vmem>>, vector<27x128xbf16>
    %1 = arith.extf %0 : vector<27x128xbf16> to vector<27x128xf32>
    %c0_1 = arith.constant 0 : index
    %c0_2 = arith.constant 0 : index
    %2 = vector.load %arg1[%c0_1, %c0_2] : memref<8x27xf32, #tpu.memory_space<vmem>>, vector<8x27xf32>
    %cst = arith.constant dense<0.000000e+00> : vector<8x128xf32>
    %3 = tpu.matmul %2, %1, %cst {dimension_numbers = #tpu.dot_dimension_numbers<[1], [0], [0], [1], [0, 0, 1, 1], [], []>} : vector<8x27xf32>, vector<27x128xf32>, vector<8x128xf32> -> vector<8x128xf32>
    %c0_3 = arith.constant 0 : index
    %c0_4 = arith.constant 0 : index
    %4 = vector.load %arg2[%c0_3, %c0_4] : memref<8x1xf32, #tpu.memory_space<vmem>>, vector<8x1xf32>
    %5 = vector.broadcast %4 : vector<8x1xf32> to vector<8x128xf32>
    %6 = arith.addf %3, %5 : vector<8x128xf32>
    %cst_5 = arith.constant 0.000000e+00 : f32
    %7 = vector.broadcast %cst_5 : f32 to vector<8x128xf32>
    %8 = arith.maximumf %6, %7 : vector<8x128xf32>
    %9 = arith.truncf %8 : vector<8x128xf32> to vector<8x128xbf16>
    %c0_6 = arith.constant 0 : index
    %c0_7 = arith.constant 0 : index
    %10 = vector.load %arg4[%c0_6, %c0_7] : memref<8x128xbf16, #tpu.memory_space<vmem>>, vector<8x128xbf16>
    tpu.vector_store %arg4[%c0_6, %c0_7], %9 {strides = array<i32>} : memref<8x128xbf16, #tpu.memory_space<vmem>>, vector<8x128xbf16>,
    return
  }
  func.func @transform_0(%arg0: i32) -> (i32, i32) {
    %c0_i32 = arith.constant 0 : i32
    %c0_i32_0 = arith.constant 0 : i32
    %c0_i32_1 = arith.constant 0 : i32
    return %c0_i32, %c0_i32_0 : i32, i32
  }
  func.func @transform_1(%arg0: i32) -> (i32, i32) {
    %c0_i32 = arith.constant 0 : i32
    %c0_i32_0 = arith.constant 0 : i32
    %c0_i32_1 = arith.constant 0 : i32
    return %c0_i32, %c0_i32_0 : i32, i32
  }
  func.func @transform_2(%arg0: i32) -> (i32, i32) {
    %c0_i32 = arith.constant 0 : i32
    %c0_i32_0 = arith.constant 0 : i32
    return %c0_i32, %arg0 : i32, i32
  }
  func.func @transform_3(%arg0: i32) -> (i32, i32) {
    %c0_i32 = arith.constant 0 : i32
    %c0_i32_0 = arith.constant 0 : i32
    return %c0_i32, %arg0 : i32, i32
  }
}

module attributes {stable_mosaic.version = 11 : i64} {
  func.func @_conv_tail_kernel(%arg0: i32, %arg1: memref<16x72xf32, #tpu.memory_space<vmem>>, %arg2: memref<16x1xf32, #tpu.memory_space<vmem>>, %arg3: memref<1x16xf32, #tpu.memory_space<vmem>>, %arg4: memref<1x1xf32, #tpu.memory_space<vmem>>, %arg5: memref<7x16xf32, #tpu.memory_space<vmem>>, %arg6: memref<7x1xf32, #tpu.memory_space<vmem>>, %arg7: memref<7x2xf32, #tpu.memory_space<vmem>>, %arg8: memref<72x128xbf16, #tpu.memory_space<vmem>>, %arg9: memref<1x2xf32, #tpu.memory_space<vmem>>, %arg10: memref<1x1xf32, #tpu.memory_space<vmem>>, %arg11: memref<16x2xf32, #tpu.memory_space<vmem>>) attributes {dimension_semantics = [#tpu.dimension_semantics<arbitrary>], iteration_bounds = array<i64: 1>, scalar_prefetch = 0 : i64, scratch_operands = 1 : i64, tpu.core_type = #tpu.core_type<tc>, window_params = [{pipeline_mode = #tpu.pipeline_mode<synchronous>, transform_indices = @transform_0, window_bounds = array<i64: 16, 72>}, {pipeline_mode = #tpu.pipeline_mode<synchronous>, transform_indices = @transform_1, window_bounds = array<i64: 16, 1>}, {pipeline_mode = #tpu.pipeline_mode<synchronous>, transform_indices = @transform_2, window_bounds = array<i64: 1, 16>}, {pipeline_mode = #tpu.pipeline_mode<synchronous>, transform_indices = @transform_3, window_bounds = array<i64: 1, 1>}, {pipeline_mode = #tpu.pipeline_mode<synchronous>, transform_indices = @transform_4, window_bounds = array<i64: 7, 16>}, {pipeline_mode = #tpu.pipeline_mode<synchronous>, transform_indices = @transform_5, window_bounds = array<i64: 7, 1>}, {pipeline_mode = #tpu.pipeline_mode<synchronous>, transform_indices = @transform_6, window_bounds = array<i64: 7, 2>}, {transform_indices = @transform_7, window_bounds = array<i64: 72, 128>}, {pipeline_mode = #tpu.pipeline_mode<synchronous>, transform_indices = @transform_8, window_bounds = array<i64: 1, 2>}, {pipeline_mode = #tpu.pipeline_mode<synchronous>, transform_indices = @transform_9, window_bounds = array<i64: 1, 1>}]} {
    %c0_i32 = arith.constant 0 : i32
    %0 = arith.cmpi eq, %arg0, %c0_i32 : i32
    %1 = arith.extui %0 : i1 to i32
    %c0_i32_0 = arith.constant 0 : i32
    %2 = arith.cmpi ne, %1, %c0_i32_0 : i32
    scf.if %2 {
      %cst_15 = arith.constant 0.000000e+00 : f32
      %33 = vector.broadcast %cst_15 : f32 to vector<16x2xf32>
      %c0_16 = arith.constant 0 : index
      %c0_17 = arith.constant 0 : index
      %34 = vector.load %arg11[%c0_16, %c0_17] : memref<16x2xf32, #tpu.memory_space<vmem>>, vector<16x2xf32>
      tpu.vector_store %arg11[%c0_16, %c0_17], %33 {strides = array<i32>} : memref<16x2xf32, #tpu.memory_space<vmem>>, vector<16x2xf32>,
    } else {
    }
    %c0 = arith.constant 0 : index
    %c0_1 = arith.constant 0 : index
    %3 = vector.load %arg8[%c0, %c0_1] : memref<72x128xbf16, #tpu.memory_space<vmem>>, vector<72x128xbf16>
    %4 = arith.extf %3 : vector<72x128xbf16> to vector<72x128xf32>
    %c0_2 = arith.constant 0 : index
    %c0_3 = arith.constant 0 : index
    %5 = vector.load %arg1[%c0_2, %c0_3] : memref<16x72xf32, #tpu.memory_space<vmem>>, vector<16x72xf32>
    %cst = arith.constant dense<0.000000e+00> : vector<16x128xf32>
    %6 = tpu.matmul %5, %4, %cst {dimension_numbers = #tpu.dot_dimension_numbers<[1], [0], [0], [1], [0, 0, 1, 1], [], []>} : vector<16x72xf32>, vector<72x128xf32>, vector<16x128xf32> -> vector<16x128xf32>
    %c0_4 = arith.constant 0 : index
    %c0_5 = arith.constant 0 : index
    %7 = vector.load %arg2[%c0_4, %c0_5] : memref<16x1xf32, #tpu.memory_space<vmem>>, vector<16x1xf32>
    %8 = vector.broadcast %7 : vector<16x1xf32> to vector<16x128xf32>
    %9 = arith.addf %6, %8 : vector<16x128xf32>
    %cst_6 = arith.constant 0.000000e+00 : f32
    %10 = vector.broadcast %cst_6 : f32 to vector<16x128xf32>
    %11 = arith.maximumf %9, %10 : vector<16x128xf32>
    %c128_i32 = arith.constant 128 : i32
    %12 = arith.muli %arg0, %c128_i32 : i32
    %13 = tpu.iota {dimensions = array<i32: 0>} : vector<128x2xi32>
    %14 = vector.broadcast %12 : i32 to vector<128x2xi32>
    %15 = arith.addi %14, %13 : vector<128x2xi32>
    %16 = tpu.iota {dimensions = array<i32: 1>} : vector<128x2xi32>
    %c16_i32 = arith.constant 16 : i32
    %17 = vector.broadcast %c16_i32 : i32 to vector<128x2xi32>
    %18 = arith.muli %16, %17 : vector<128x2xi32>
    %19 = arith.cmpi sge, %15, %18 : vector<128x2xi32>
    %c16_i32_7 = arith.constant 16 : i32
    %20 = vector.broadcast %c16_i32_7 : i32 to vector<128x2xi32>
    %21 = arith.addi %18, %20 : vector<128x2xi32>
    %22 = arith.cmpi slt, %15, %21 : vector<128x2xi32>
    %23 = arith.andi %19, %22 : vector<128x2xi1>
    %24 = arith.extui %23 : vector<128x2xi1> to vector<128x2xi32>
    %25 = arith.sitofp %24 : vector<128x2xi32> to vector<128x2xf32>
    %c0_8 = arith.constant 0 : index
    %c0_9 = arith.constant 0 : index
    %26 = vector.load %arg11[%c0_8, %c0_9] : memref<16x2xf32, #tpu.memory_space<vmem>>, vector<16x2xf32>
    %cst_10 = arith.constant dense<0.000000e+00> : vector<16x2xf32>
    %27 = tpu.matmul %11, %25, %cst_10 {dimension_numbers = #tpu.dot_dimension_numbers<[1], [0], [0], [1], [0, 0, 1, 1], [], []>} : vector<16x128xf32>, vector<128x2xf32>, vector<16x2xf32> -> vector<16x2xf32>
    %28 = arith.addf %26, %27 : vector<16x2xf32>
    %c0_11 = arith.constant 0 : index
    %c0_12 = arith.constant 0 : index
    %29 = vector.load %arg11[%c0_11, %c0_12] : memref<16x2xf32, #tpu.memory_space<vmem>>, vector<16x2xf32>
    tpu.vector_store %arg11[%c0_11, %c0_12], %28 {strides = array<i32>} : memref<16x2xf32, #tpu.memory_space<vmem>>, vector<16x2xf32>,
    %c0_i32_13 = arith.constant 0 : i32
    %30 = arith.cmpi eq, %arg0, %c0_i32_13 : i32
    %31 = arith.extui %30 : i1 to i32
    %c0_i32_14 = arith.constant 0 : i32
    %32 = arith.cmpi ne, %31, %c0_i32_14 : i32
    scf.if %32 {
      %c0_15 = arith.constant 0 : index
      %c0_16 = arith.constant 0 : index
      %33 = vector.load %arg11[%c0_15, %c0_16] : memref<16x2xf32, #tpu.memory_space<vmem>>, vector<16x2xf32>
      %cst_17 = arith.constant 6.250000e-02 : f32
      %34 = vector.broadcast %cst_17 : f32 to vector<16x2xf32>
      %35 = arith.mulf %33, %34 : vector<16x2xf32>
      %c0_18 = arith.constant 0 : index
      %c0_19 = arith.constant 0 : index
      %36 = vector.load %arg3[%c0_18, %c0_19] : memref<1x16xf32, #tpu.memory_space<vmem>>, vector<1x16xf32>
      %cst_20 = arith.constant dense<0.000000e+00> : vector<1x2xf32>
      %37 = tpu.matmul %36, %35, %cst_20 {dimension_numbers = #tpu.dot_dimension_numbers<[1], [0], [0], [1], [0, 0, 1, 1], [], []>} : vector<1x16xf32>, vector<16x2xf32>, vector<1x2xf32> -> vector<1x2xf32>
      %c0_21 = arith.constant 0 : index
      %c0_22 = arith.constant 0 : index
      %38 = vector.load %arg4[%c0_21, %c0_22] : memref<1x1xf32, #tpu.memory_space<vmem>>, vector<1x1xf32>
      %39 = vector.broadcast %38 : vector<1x1xf32> to vector<1x2xf32>
      %40 = arith.addf %37, %39 : vector<1x2xf32>
      %c0_23 = arith.constant 0 : index
      %c0_24 = arith.constant 0 : index
      %41 = vector.load %arg5[%c0_23, %c0_24] : memref<7x16xf32, #tpu.memory_space<vmem>>, vector<7x16xf32>
      %cst_25 = arith.constant dense<0.000000e+00> : vector<7x2xf32>
      %42 = tpu.matmul %41, %35, %cst_25 {dimension_numbers = #tpu.dot_dimension_numbers<[1], [0], [0], [1], [0, 0, 1, 1], [], []>} : vector<7x16xf32>, vector<16x2xf32>, vector<7x2xf32> -> vector<7x2xf32>
      %c0_26 = arith.constant 0 : index
      %c0_27 = arith.constant 0 : index
      %43 = vector.load %arg6[%c0_26, %c0_27] : memref<7x1xf32, #tpu.memory_space<vmem>>, vector<7x1xf32>
      %44 = vector.broadcast %43 : vector<7x1xf32> to vector<7x2xf32>
      %45 = arith.addf %42, %44 : vector<7x2xf32>
      %c0_28 = arith.constant 0 : index
      %c0_29 = arith.constant 0 : index
      %46 = vector.load %arg9[%c0_28, %c0_29] : memref<1x2xf32, #tpu.memory_space<vmem>>, vector<1x2xf32>
      tpu.vector_store %arg9[%c0_28, %c0_29], %40 {strides = array<i32>} : memref<1x2xf32, #tpu.memory_space<vmem>>, vector<1x2xf32>,
      %cst_30 = arith.constant dense<0xFF800000> : vector<2xf32>
      %47 = vector.multi_reduction <maximumf>, %45, %cst_30 [0] : vector<7x2xf32> to vector<2xf32>
      %48 = vector.shape_cast %47 : vector<2xf32> to vector<1x2xf32>
      %49 = vector.broadcast %48 : vector<1x2xf32> to vector<7x2xf32>
      %50 = arith.subf %45, %49 : vector<7x2xf32>
      %51 = math.exp %50 : vector<7x2xf32>
      %cst_31 = arith.constant dense<0.000000e+00> : vector<2xf32>
      %52 = vector.multi_reduction <add>, %51, %cst_31 [0] : vector<7x2xf32> to vector<2xf32>
      %53 = vector.shape_cast %52 : vector<2xf32> to vector<1x2xf32>
      %54 = math.log %53 : vector<1x2xf32>
      %55 = arith.addf %54, %48 : vector<1x2xf32>
      %56 = vector.broadcast %55 : vector<1x2xf32> to vector<7x2xf32>
      %57 = arith.subf %45, %56 : vector<7x2xf32>
      %c0_32 = arith.constant 0 : index
      %c0_33 = arith.constant 0 : index
      %58 = vector.load %arg7[%c0_32, %c0_33] : memref<7x2xf32, #tpu.memory_space<vmem>>, vector<7x2xf32>
      %59 = arith.mulf %58, %57 : vector<7x2xf32>
      %cst_34 = arith.constant dense<0.000000e+00> : vector<2xf32>
      %60 = vector.multi_reduction <add>, %59, %cst_34 [0] : vector<7x2xf32> to vector<2xf32>
      %61 = vector.shape_cast %60 : vector<2xf32> to vector<1x2xf32>
      %cst_35 = arith.constant 0.000000e+00 : f32
      %62 = vector.broadcast %cst_35 : f32 to vector<1x2xf32>
      %63 = arith.subf %62, %61 : vector<1x2xf32>
      %cst_36 = arith.constant dense<0.000000e+00> : vector<1xf32>
      %64 = vector.multi_reduction <add>, %63, %cst_36 [1] : vector<1x2xf32> to vector<1xf32>
      %65 = vector.shape_cast %64 : vector<1xf32> to vector<1x1xf32>
      %cst_37 = arith.constant 2.000000e+00 : f32
      %66 = vector.broadcast %cst_37 : f32 to vector<1x1xf32>
      %67 = arith.divf %65, %66 : vector<1x1xf32>
      %c0_38 = arith.constant 0 : index
      %c0_39 = arith.constant 0 : index
      %68 = vector.load %arg10[%c0_38, %c0_39] : memref<1x1xf32, #tpu.memory_space<vmem>>, vector<1x1xf32>
      tpu.vector_store %arg10[%c0_38, %c0_39], %67 {strides = array<i32>} : memref<1x1xf32, #tpu.memory_space<vmem>>, vector<1x1xf32>,
    } else {
    }
    return
  }
  func.func @transform_0(%arg0: i32) -> (i32, i32) {
    %c0_i32 = arith.constant 0 : i32
    %c0_i32_0 = arith.constant 0 : i32
    %c0_i32_1 = arith.constant 0 : i32
    return %c0_i32, %c0_i32_0 : i32, i32
  }
  func.func @transform_1(%arg0: i32) -> (i32, i32) {
    %c0_i32 = arith.constant 0 : i32
    %c0_i32_0 = arith.constant 0 : i32
    %c0_i32_1 = arith.constant 0 : i32
    return %c0_i32, %c0_i32_0 : i32, i32
  }
  func.func @transform_2(%arg0: i32) -> (i32, i32) {
    %c0_i32 = arith.constant 0 : i32
    %c0_i32_0 = arith.constant 0 : i32
    %c0_i32_1 = arith.constant 0 : i32
    return %c0_i32, %c0_i32_0 : i32, i32
  }
  func.func @transform_3(%arg0: i32) -> (i32, i32) {
    %c0_i32 = arith.constant 0 : i32
    %c0_i32_0 = arith.constant 0 : i32
    %c0_i32_1 = arith.constant 0 : i32
    return %c0_i32, %c0_i32_0 : i32, i32
  }
  func.func @transform_4(%arg0: i32) -> (i32, i32) {
    %c0_i32 = arith.constant 0 : i32
    %c0_i32_0 = arith.constant 0 : i32
    %c0_i32_1 = arith.constant 0 : i32
    return %c0_i32, %c0_i32_0 : i32, i32
  }
  func.func @transform_5(%arg0: i32) -> (i32, i32) {
    %c0_i32 = arith.constant 0 : i32
    %c0_i32_0 = arith.constant 0 : i32
    %c0_i32_1 = arith.constant 0 : i32
    return %c0_i32, %c0_i32_0 : i32, i32
  }
  func.func @transform_6(%arg0: i32) -> (i32, i32) {
    %c0_i32 = arith.constant 0 : i32
    %c0_i32_0 = arith.constant 0 : i32
    %c0_i32_1 = arith.constant 0 : i32
    return %c0_i32, %c0_i32_0 : i32, i32
  }
  func.func @transform_7(%arg0: i32) -> (i32, i32) {
    %c0_i32 = arith.constant 0 : i32
    %c0_i32_0 = arith.constant 0 : i32
    return %c0_i32, %arg0 : i32, i32
  }
  func.func @transform_8(%arg0: i32) -> (i32, i32) {
    %c0_i32 = arith.constant 0 : i32
    %c0_i32_0 = arith.constant 0 : i32
    %c0_i32_1 = arith.constant 0 : i32
    return %c0_i32, %c0_i32_0 : i32, i32
  }
  func.func @transform_9(%arg0: i32) -> (i32, i32) {
    %c0_i32 = arith.constant 0 : i32
    %c0_i32_0 = arith.constant 0 : i32
    %c0_i32_1 = arith.constant 0 : i32
    return %c0_i32, %c0_i32_0 : i32, i32
  }
}

</mosaic_0001>

<llo_original>
// kernel: ac_discriminator_forward.2
$region0: #{ac_discriminator_forward.2}
  #allocation0 [shape = 'u32[]', space=smem, size = 0x4, offset = 0x4, fixed_abs, tag = 'smem constant byte address 0x4 - core index']
  #allocation1 [shape = 'u32[144,128]{1,0:T(1,128)}', space=vmem, size = 0x12000, scoped, tag = 'internal scratch']
  %s0 = inlined_call_operand.vmem [shape: f32[8,27], index: 0, kind: input, shape index: {}]
  %s1 = inlined_call_operand.vmem [shape: f32[8,1], index: 1, kind: input, shape index: {}]
  %s2 = inlined_call_operand.vmem [shape: bf16[27,128], index: 2, kind: input, shape index: {}]
  %s3 = inlined_call_operand.vmem [shape: bf16[8,128], index: 3, kind: output, shape index: {}]
  %s4 = sld [smem:[#allocation0]]
  $region22: #{ac_discriminator_forward.2} parent=0
    _
  %s6 = ssub.s32 1, %s4
  %s7 = scalar_select 0, %s6, %s4
  // Predicated region
  $region2: #{ac_discriminator_forward.2} parent=0 // pred_check
    _
  $region3: #{ac_discriminator_forward.2} parent=0 // pred_check_branch
    %9 = sbr.rel (0) target = $region5
  $region4: #{ac_discriminator_forward.2} parent=0 // pred_region
    _
  $region5: #{ac_discriminator_forward.2} parent=0 // pred_fallthru
    _
  // Predicated region
  $region6: #{ac_discriminator_forward.2} parent=0 // pred_check
    _
  $region7: #{ac_discriminator_forward.2} parent=0 // pred_check_branch
    %11 = sbr.rel (0) target = $region9
  $region8: #{ac_discriminator_forward.2} parent=0 // pred_region
    _
  $region9: #{ac_discriminator_forward.2} parent=0 // pred_fallthru
    _
  // Predicated region
  $region10: #{ac_discriminator_forward.2} parent=0 // pred_check
    _
  $region11: #{ac_discriminator_forward.2} parent=0 // pred_check_branch
    %13 = sbr.rel (0) target = $region13
  $region12: #{ac_discriminator_forward.2} parent=0 // pred_region
    _
  $region13: #{ac_discriminator_forward.2} parent=0 // pred_fallthru
    _
  %v14 = vld [vmem:[%s2] sm:$0xf]
  %v15 = vld [vmem:[%s2 + $0x4] sm:$0xf]
  %v16 = vld [vmem:[%s2 + $0x8] sm:$0xf]
  %v17 = vld [vmem:[%s2 + $0xc] sm:$0x3]
  %v18 = vunpack.c.l.bf16 %v14
  %v19 = vunpack.c.l.bf16 %v15
  %v20 = vunpack.c.l.bf16 %v16
  %v21 = vunpack.c.l.bf16 %v17
  %v22 = vld [vmem:[%s0] sm:$0xff]
  %v23 = vld [vmem:[%s1] sm:$0xff]
  %25 = vset.pattern.permute.xlu0 0
  %26 = vperm.xlu0 %25, %v23
  %v27 = vpop.permute.xlu0 %26
  %vm29 = vcmask 220160
  %v31 = vsel %vm29, %v22, 0
  %vm33 = vcmask 1042432
  %v35 = vsel %vm33, %v21, 0
  %37 = vmatprep.subr.mxu0 0.0
  %38 = vmatpush1.msra.mxu0 %v18
  %39 = vmatprep.subr.mxu0 0.0
  %40 = vmatpush1.msra.mxu0 %v19
  %41 = vmatprep.subr.mxu0 0.0
  %42 = vmatpush1.msra.mxu0 %v20
  %43 = vmatprep.subr.mxu0 0.0
  %44 = vmatpush1.msra.mxu0 %v35
  %45 = vmatprep.subr.mxu0 0.0
  %46 = vmatpush1.msra.mxu0 0.0
  %47 = vmatprep.subr.mxu0 0.0
  %48 = vmatpush1.msra.mxu0 0.0
  %49 = vmatprep.subr.mxu0 0.0
  %50 = vmatpush1.msra.mxu0 0.0
  %51 = vmatprep.subr.mxu0 0.0
  %52 = vmatpush1.msra.mxu0 0.0
  %53 = vmatprep.subr.mxu0 0.0
  %54 = vmatpush1.msra.mxu0 0.0
  %55 = vmatprep.subr.mxu0 0.0
  %56 = vmatpush1.msra.mxu0 0.0
  %57 = vmatprep.subr.mxu0 0.0
  %58 = vmatpush1.msra.mxu0 0.0
  %59 = vmatprep.subr.mxu0 0.0
  %60 = vmatpush1.msra.mxu0 0.0
  %61 = vmatprep.subr.mxu0 0.0
  %62 = vmatpush1.msra.mxu0 0.0
  %63 = vmatprep.subr.mxu0 0.0
  %64 = vmatpush1.msra.mxu0 0.0
  %65 = vmatprep.subr.mxu0 0.0
  %66 = vmatpush1.msra.mxu0 0.0
  %67 = vmatprep.subr.mxu0 0.0
  %68 = vmatpush1.msra.mxu0 0.0
  %69 = vmatprep.subr.mxu0 0.0
  %70 = vmatpush1.msra.mxu0 0.0
  %71 = vmatprep.subr.mxu0 0.0
  %72 = vmatpush1.msra.mxu0 0.0
  %73 = vmatprep.subr.mxu0 0.0
  %74 = vmatpush1.msra.mxu0 0.0
  %75 = vmatprep.subr.mxu0 0.0
  %76 = vmatpush1.msra.mxu0 0.0
  %77 = vmatprep.subr.mxu0 0.0
  %78 = vmatpush1.msra.mxu0 0.0
  %79 = vmatprep.subr.mxu0 0.0
  %80 = vmatpush1.msra.mxu0 0.0
  %81 = vmatprep.subr.mxu0 0.0
  %82 = vmatpush1.msra.mxu0 0.0
  %83 = vmatprep.subr.mxu0 0.0
  %84 = vmatpush1.msra.mxu0 0.0
  %85 = vmatprep.subr.mxu0 0.0
  %86 = vmatpush1.msra.mxu0 0.0
  %87 = vmatprep.subr.mxu0 0.0
  %88 = vmatpush1.msra.mxu0 0.0
  %89 = vmatprep.subr.mxu0 0.0
  %90 = vmatpush1.msra.mxu0 0.0
  %91 = vmatprep.subr.mxu0 0.0
  %92 = vmatpush1.msra.mxu0 0.0
  %93 = vmatprep.subr.mxu0 0.0
  %94 = vmatpush1.msra.mxu0 0.0
  %95 = vmatprep.subr.mxu0 0.0
  %96 = vmatpush1.msra.mxu0 0.0
  %97 = vmatprep.subr.mxu0 0.0
  %98 = vmatpush1.msra.mxu0 0.0
  %99 = vmatprep.subr.mxu0 0.0
  %100 = vmatpush1.msra.mxu0 0.0
  %101 = vmatprep.mubr.f32.mxu0 0.0
  %102 = vmatmul.mubr.f32.gmra.mrb[0].mxu0 %v31
  %v103 = vpop.f32.mrb[0].mxu0
  %v104 = vadd.f32 %v27, %v103
  %v105 = vpop.f32.mrb[0].mxu0
  %106 = vdwg.mxu0
  %v107 = vmax.f32 %v104, 0.0
  %v108 = vpack.c.bf16 %v107, %v107
  %109 = vst [vmem:[%s3] sm:$0xf] %v108
  // Predicated region
  $region14: #{ac_discriminator_forward.2} parent=0 // pred_check
    _
  $region15: #{ac_discriminator_forward.2} parent=0 // pred_check_branch
    %111 = sbr.rel (0) target = $region17
  $region16: #{ac_discriminator_forward.2} parent=0 // pred_region
    _
  $region17: #{ac_discriminator_forward.2} parent=0 // pred_fallthru
    _
  // Predicated region
  $region18: #{ac_discriminator_forward.2} parent=0 // pred_check
    _
  $region19: #{ac_discriminator_forward.2} parent=0 // pred_check_branch
    %113 = sbr.rel (0) target = $region21
  $region20: #{ac_discriminator_forward.2} parent=0 // pred_region
    _
  $region21: #{ac_discriminator_forward.2} parent=0 // pred_fallthru
    _

// kernel: ac_discriminator_forward.3
$region0: #{ac_discriminator_forward.3}
  #allocation0 [shape = 'u32[]', space=smem, size = 0x4, offset = 0x4, fixed_abs, tag = 'smem constant byte address 0x4 - core index']
  #allocation1 [shape = 'u32[144,128]{1,0:T(1,128)}', space=vmem, size = 0x12000, scoped, tag = 'internal scratch']
  #allocation2 [shape = 'f32[16,2]{1,0:T(8,128)}', space=vmem, size = 0x2000, scoped, tag = 'scratch operand']
  #allocation3 [shape = 'f32[1,1]{1,0:T(1,128)S(1)}', space=vmem, size = 0x200, scoped, tag = 'scoped memory for ac_discriminator_forward.3']
  %s0 = inlined_call_operand.vmem [shape: f32[16,72], index: 0, kind: input, shape index: {}]
  %s1 = inlined_call_operand.vmem [shape: f32[16,1], index: 1, kind: input, shape index: {}]
  %s2 = inlined_call_operand.vmem [shape: f32[1,16], index: 2, kind: input, shape index: {}]
  %s3 = inlined_call_operand.<no memory space> [shape: f32[1,1], index: 3, kind: input, shape index: {}]
  %s4 = inlined_call_operand.vmem [shape: f32[7,16], index: 4, kind: input, shape index: {}]
  %s5 = inlined_call_operand.vmem [shape: f32[7,1], index: 5, kind: input, shape index: {}]
  %s6 = inlined_call_operand.vmem [shape: f32[7,2], index: 6, kind: input, shape index: {}]
  %s7 = inlined_call_operand.vmem [shape: bf16[72,128], index: 7, kind: input, shape index: {}]
  %s8 = inlined_call_operand.hbm [shape: f32[1,2], index: 8, kind: output, shape index: {0}]
  %s9 = inlined_call_operand.hbm [shape: f32[1,1], index: 9, kind: output, shape index: {1}]
  %10 = xla_tuple %s8, %s9
  %s11 = sld [smem:[#allocation0]]
  $region58: #{ac_discriminator_forward.3} parent=0
    _
  %s13 = ssub.s32 1, %s11
  %s14 = scalar_select 0, %s13, %s11
  %v15 = vstv %s3
  %16 = vst [vmem:[#allocation3] sm:$0x1] %v15
  $region1: #{ac_discriminator_forward.3} parent=0
    #allocation4 [shape = 'u8[512]{0}', space=vmem, size = 0x400, scoped, tag = 'output window, operand 0, single buffered']
    #allocation5 [shape = 's32[1]{0}', space=sflag, size = 0x4, scoped, tag = 'scoped memory for ac_discriminator_forward.3']
    #allocation6 [shape = 'u8[512]{0}', space=vmem, size = 0x400, scoped, tag = 'output window, operand 1, single buffered']
    #allocation7 [shape = 's32[1]{0}', space=sflag, size = 0x4, scoped, tag = 'scoped memory for ac_discriminator_forward.3']
    %17 = vsyncpa [#allocation5], 0
    %18 = vsyncpa [#allocation7], 0
    // Predicated region
    $region2: #{ac_discriminator_forward.3} parent=1 // pred_check
      _
    $region3: #{ac_discriminator_forward.3} parent=1 // pred_check_branch
      %20 = sbr.rel (0) target = $region5
    $region4: #{ac_discriminator_forward.3} parent=1 // pred_region
      _
    $region5: #{ac_discriminator_forward.3} parent=1 // pred_fallthru
      _
    // Predicated region
    $region6: #{ac_discriminator_forward.3} parent=1 // pred_check
      _
    $region7: #{ac_discriminator_forward.3} parent=1 // pred_check_branch
      %22 = sbr.rel (0) target = $region9
    $region8: #{ac_discriminator_forward.3} parent=1 // pred_region
      _
    $region9: #{ac_discriminator_forward.3} parent=1 // pred_fallthru
      _
    // Predicated region
    $region10: #{ac_discriminator_forward.3} parent=1 // pred_check
      _
    $region11: #{ac_discriminator_forward.3} parent=1 // pred_check_branch
      %24 = sbr.rel (0) target = $region13
    $region12: #{ac_discriminator_forward.3} parent=1 // pred_region
      _
    $region13: #{ac_discriminator_forward.3} parent=1 // pred_fallthru
      _
    // Predicated region
    $region14: #{ac_discriminator_forward.3} parent=1 // pred_check
      _
    $region15: #{ac_discriminator_forward.3} parent=1 // pred_check_branch
      %26 = sbr.rel (0) target = $region17
    $region16: #{ac_discriminator_forward.3} parent=1 // pred_region
      _
    $region17: #{ac_discriminator_forward.3} parent=1 // pred_fallthru
      _
    // Predicated region
    $region18: #{ac_discriminator_forward.3} parent=1 // pred_check
      _
    $region19: #{ac_discriminator_forward.3} parent=1 // pred_check_branch
      %28 = sbr.rel (0) target = $region21
    $region20: #{ac_discriminator_forward.3} parent=1 // pred_region
      _
    $region21: #{ac_discriminator_forward.3} parent=1 // pred_fallthru
      _
    // Predicated region
    $region22: #{ac_discriminator_forward.3} parent=1 // pred_check
      _
    $region23: #{ac_discriminator_forward.3} parent=1 // pred_check_branch
      %30 = sbr.rel (0) target = $region25
    $region24: #{ac_discriminator_forward.3} parent=1 // pred_region
      _
    $region25: #{ac_discriminator_forward.3} parent=1 // pred_fallthru
      _
    // Predicated region
    $region26: #{ac_discriminator_forward.3} parent=1 // pred_check
      _
    $region27: #{ac_discriminator_forward.3} parent=1 // pred_check_branch
      %32 = sbr.rel (0) target = $region29
    $region28: #{ac_discriminator_forward.3} parent=1 // pred_region
      _
    $region29: #{ac_discriminator_forward.3} parent=1 // pred_fallthru
      _
    // Predicated region
    $region30: #{ac_discriminator_forward.3} parent=1 // pred_check
      _
    $region31: #{ac_discriminator_forward.3} parent=1 // pred_check_branch
      %34 = sbr.rel (0) target = $region33
    $region32: #{ac_discriminator_forward.3} parent=1 // pred_region
      _
    $region33: #{ac_discriminator_forward.3} parent=1 // pred_fallthru
      _
    %p35 = scmp.eq.s32.totalorder 0, 0
    // Predicated region
    $region34: #{ac_discriminator_forward.3} parent=1 // pred_check
      %p36 = pneg %p35
    $region35: #{ac_discriminator_forward.3} parent=1 // pred_check_branch
      %38 = sbr.rel (%p36) target = $region37
    $region36: #{ac_discriminator_forward.3} parent=1 // pred_region
      %vm39 = vcmask 15360
      %40 = vst.msk [vmem:[#allocation2] sm:$0xff] %vm39, 0.0
      %41 = vst.msk [vmem:[#allocation2 + $0x8] sm:$0xff] %vm39, 0.0
    $region37: #{ac_discriminator_forward.3} parent=1 // pred_fallthru
      _
    %v42 = vld [vmem:[%s7] sm:$0xf]
    %v43 = vld [vmem:[%s7 + $0x4] sm:$0xf]
    %v44 = vld [vmem:[%s7 + $0x8] sm:$0xf]
    %v45 = vld [vmem:[%s7 + $0xc] sm:$0xf]
    %v46 = vld [vmem:[%s7 + $0x10] sm:$0xf]
    %v47 = vld [vmem:[%s7 + $0x14] sm:$0xf]
    %v48 = vld [vmem:[%s7 + $0x18] sm:$0xf]
    %v49 = vld [vmem:[%s7 + $0x1c] sm:$0xf]
    %v50 = vld [vmem:[%s7 + $0x20] sm:$0xf]
    %v51 = vunpack.c.l.bf16 %v42
    %v52 = vunpack.c.l.bf16 %v43
    %v53 = vunpack.c.l.bf16 %v44
    %v54 = vunpack.c.l.bf16 %v45
    %v55 = vunpack.c.l.bf16 %v46
    %v56 = vunpack.c.l.bf16 %v47
    %v57 = vunpack.c.l.bf16 %v48
    %v58 = vunpack.c.l.bf16 %v49
    %v59 = vunpack.c.l.bf16 %v50
    %v60 = vld [vmem:[%s0] sm:$0xff]
    %v61 = vld [vmem:[%s0 + $0x8] sm:$0xff]
    %v62 = vld [vmem:[%s1] sm:$0xff]
    %v63 = vld [vmem:[%s1 + $0x8] sm:$0xff]
    %65 = vset.pattern.permute.xlu0 0
    %66 = vperm.xlu0 %65, %v62
    %v67 = vpop.permute.xlu0 %66
    %70 = vset.pattern.permute.xlu0 0
    %71 = vperm.xlu0 %70, %v63
    %v72 = vpop.permute.xlu0 %71
    %vm74 = vcmask 588800
    %v76 = vsel %vm74, %v60, 0
    %v79 = vsel %vm74, %v61, 0
    %81 = vmatprep.subr.mxu0 0.0
    %82 = vmatpush1.msra.mxu0 %v51
    %83 = vmatprep.subr.mxu0 0.0
    %84 = vmatpush1.msra.mxu0 %v52
    %85 = vmatprep.subr.mxu0 0.0
    %86 = vmatpush1.msra.mxu0 %v53
    %87 = vmatprep.subr.mxu0 0.0
    %88 = vmatpush1.msra.mxu0 %v54
    %89 = vmatprep.subr.mxu0 0.0
    %90 = vmatpush1.msra.mxu0 %v55
    %91 = vmatprep.subr.mxu0 0.0
    %92 = vmatpush1.msra.mxu0 %v56
    %93 = vmatprep.subr.mxu0 0.0
    %94 = vmatpush1.msra.mxu0 %v57
    %95 = vmatprep.subr.mxu0 0.0
    %96 = vmatpush1.msra.mxu0 %v58
    %97 = vmatprep.subr.mxu0 0.0
    %98 = vmatpush1.msra.mxu0 %v59
    %99 = vmatprep.subr.mxu0 0.0
    %100 = vmatpush1.msra.mxu0 0.0
    %101 = vmatprep.subr.mxu0 0.0
    %102 = vmatpush1.msra.mxu0 0.0
    %103 = vmatprep.subr.mxu0 0.0
    %104 = vmatpush1.msra.mxu0 0.0
    %105 = vmatprep.subr.mxu0 0.0
    %106 = vmatpush1.msra.mxu0 0.0
    %107 = vmatprep.subr.mxu0 0.0
    %108 = vmatpush1.msra.mxu0 0.0
    %109 = vmatprep.subr.mxu0 0.0
    %110 = vmatpush1.msra.mxu0 0.0
    %111 = vmatprep.subr.mxu0 0.0
    %112 = vmatpush1.msra.mxu0 0.0
    %113 = vmatprep.subr.mxu0 0.0
    %114 = vmatpush1.msra.mxu0 0.0
    %115 = vmatprep.subr.mxu0 0.0
    %116 = vmatpush1.msra.mxu0 0.0
    %117 = vmatprep.subr.mxu0 0.0
    %118 = vmatpush1.msra.mxu0 0.0
    %119 = vmatprep.subr.mxu0 0.0
    %120 = vmatpush1.msra.mxu0 0.0
    %121 = vmatprep.subr.mxu0 0.0
    %122 = vmatpush1.msra.mxu0 0.0
    %123 = vmatprep.subr.mxu0 0.0
    %124 = vmatpush1.msra.mxu0 0.0
    %125 = vmatprep.subr.mxu0 0.0
    %126 = vmatpush1.msra.mxu0 0.0
    %127 = vmatprep.subr.mxu0 0.0
    %128 = vmatpush1.msra.mxu0 0.0
    %129 = vmatprep.subr.mxu0 0.0
    %130 = vmatpush1.msra.mxu0 0.0
    %131 = vmatprep.subr.mxu0 0.0
    %132 = vmatpush1.msra.mxu0 0.0
    %133 = vmatprep.subr.mxu0 0.0
    %134 = vmatpush1.msra.mxu0 0.0
    %135 = vmatprep.subr.mxu0 0.0
    %136 = vmatpush1.msra.mxu0 0.0
    %137 = vmatprep.subr.mxu0 0.0
    %138 = vmatpush1.msra.mxu0 0.0
    %139 = vmatprep.subr.mxu0 0.0
    %140 = vmatpush1.msra.mxu0 0.0
    %141 = vmatprep.subr.mxu0 0.0
    %142 = vmatpush1.msra.mxu0 0.0
    %143 = vmatprep.subr.mxu0 0.0
    %144 = vmatpush1.msra.mxu0 0.0
    %145 = vmatprep.mubr.f32.mxu0 0.0
    %146 = vmatmul.mubr.f32.gmra.mrb[0].mxu0 %v76
    %v147 = vpop.f32.mrb[0].mxu0
    %v148 = vadd.f32 %v67, %v147
    %v149 = vpop.f32.mrb[0].mxu0
    %150 = vmatprep.mubr.f32.mxu0 0.0
    %151 = vmatmul.mubr.f32.gmra.mrb[0].mxu0 %v79
    %v152 = vpop.f32.mrb[0].mxu0
    %v153 = vadd.f32 %v72, %v152
    %v154 = vpop.f32.mrb[0].mxu0
    %155 = vdwg.mxu0
    %v156 = vmax.f32 %v148, 0.0
    %v157 = vmax.f32 %v153, 0.0
    %s158 = smul.u32 0, 128
    %v159 = vlaneseq
    %v160 = vshrl.u32 %v159, 7
    %v161 = vadd.s32 %v160, 8
    %v162 = vadd.s32 %v160, 16
    %v163 = vadd.s32 %v160, 24
    %v164 = vadd.s32 %v160, 32
    %v165 = vadd.s32 %v160, 40
    %v166 = vadd.s32 %v160, 48
    %v167 = vadd.s32 %v160, 56
    %v168 = vadd.s32 %v160, 64
    %v169 = vadd.s32 %v160, 72
    %v170 = vadd.s32 %v160, 80
    %v171 = vadd.s32 %v160, 88
    %v172 = vadd.s32 %v160, 96
    %v173 = vadd.s32 %v160, 104
    %v174 = vadd.s32 %v160, 112
    %v175 = vadd.s32 %v160, 120
    %v176 = vstv %s158
    %v177 = vadd.s32 %v176, %v160
    %v178 = vadd.s32 %v176, %v161
    %v179 = vadd.s32 %v176, %v162
    %v180 = vadd.s32 %v176, %v163
    %v181 = vadd.s32 %v176, %v164
    %v182 = vadd.s32 %v176, %v165
    %v183 = vadd.s32 %v176, %v166
    %v184 = vadd.s32 %v176, %v167
    %v185 = vadd.s32 %v176, %v168
    %v186 = vadd.s32 %v176, %v169
    %v187 = vadd.s32 %v176, %v170
    %v188 = vadd.s32 %v176, %v171
    %v189 = vadd.s32 %v176, %v172
    %v190 = vadd.s32 %v176, %v173
    %v191 = vadd.s32 %v176, %v174
    %v192 = vadd.s32 %v176, %v175
    %v193 = vlaneseq
    %v194 = vand.u32 %v193, 127
    %v195 = vmul.u32 %v194, 16
    %vm196 = vcmp.ge.s32.totalorder %v177, %v195
    %vm197 = vcmp.ge.s32.totalorder %v178, %v195
    %vm198 = vcmp.ge.s32.totalorder %v179, %v195
    %vm199 = vcmp.ge.s32.totalorder %v180, %v195
    %vm200 = vcmp.ge.s32.totalorder %v181, %v195
    %vm201 = vcmp.ge.s32.totalorder %v182, %v195
    %vm202 = vcmp.ge.s32.totalorder %v183, %v195
    %vm203 = vcmp.ge.s32.totalorder %v184, %v195
    %vm204 = vcmp.ge.s32.totalorder %v185, %v195
    %vm205 = vcmp.ge.s32.totalorder %v186, %v195
    %vm206 = vcmp.ge.s32.totalorder %v187, %v195
    %vm207 = vcmp.ge.s32.totalorder %v188, %v195
    %vm208 = vcmp.ge.s32.totalorder %v189, %v195
    %vm209 = vcmp.ge.s32.totalorder %v190, %v195
    %vm210 = vcmp.ge.s32.totalorder %v191, %v195
    %vm211 = vcmp.ge.s32.totalorder %v192, %v195
    %v212 = vadd.s32 %v195, 16
    %vm213 = vcmp.lt.s32.totalorder %v177, %v212
    %vm214 = vcmp.lt.s32.totalorder %v178, %v212
    %vm215 = vcmp.lt.s32.totalorder %v179, %v212
    %vm216 = vcmp.lt.s32.totalorder %v180, %v212
    %vm217 = vcmp.lt.s32.totalorder %v181, %v212
    %vm218 = vcmp.lt.s32.totalorder %v182, %v212
    %vm219 = vcmp.lt.s32.totalorder %v183, %v212
    %vm220 = vcmp.lt.s32.totalorder %v184, %v212
    %vm221 = vcmp.lt.s32.totalorder %v185, %v212
    %vm222 = vcmp.lt.s32.totalorder %v186, %v212
    %vm223 = vcmp.lt.s32.totalorder %v187, %v212
    %vm224 = vcmp.lt.s32.totalorder %v188, %v212
    %vm225 = vcmp.lt.s32.totalorder %v189, %v212
    %vm226 = vcmp.lt.s32.totalorder %v190, %v212
    %vm227 = vcmp.lt.s32.totalorder %v191, %v212
    %vm228 = vcmp.lt.s32.totalorder %v192, %v212
    %vm229 = vmand %vm196, %vm213
    %vm230 = vmand %vm197, %vm214
    %vm231 = vmand %vm198, %vm215
    %vm232 = vmand %vm199, %vm216
    %vm233 = vmand %vm200, %vm217
    %vm234 = vmand %vm201, %vm218
    %vm235 = vmand %vm202, %vm219
    %vm236 = vmand %vm203, %vm220
    %vm237 = vmand %vm204, %vm221
    %vm238 = vmand %vm205, %vm222
    %vm239 = vmand %vm206, %vm223
    %vm240 = vmand %vm207, %vm224
    %vm241 = vmand %vm208, %vm225
    %vm242 = vmand %vm209, %vm226
    %vm243 = vmand %vm210, %vm227
    %vm244 = vmand %vm211, %vm228
    %v245 = vsel %vm229, 1, 0
    %v246 = vsel %vm230, 1, 0
    %v247 = vsel %vm231, 1, 0
    %v248 = vsel %vm232, 1, 0
    %v249 = vsel %vm233, 1, 0
    %v250 = vsel %vm234, 1, 0
    %v251 = vsel %vm235, 1, 0
    %v252 = vsel %vm236, 1, 0
    %v253 = vsel %vm237, 1, 0
    %v254 = vsel %vm238, 1, 0
    %v255 = vsel %vm239, 1, 0
    %v256 = vsel %vm240, 1, 0
    %v257 = vsel %vm241, 1, 0
    %v258 = vsel %vm242, 1, 0
    %v259 = vsel %vm243, 1, 0
    %v260 = vsel %vm244, 1, 0
    %v261 = vcvt.s32.f32 %v245
    %v262 = vcvt.s32.f32 %v246
    %v263 = vcvt.s32.f32 %v247
    %v264 = vcvt.s32.f32 %v248
    %v265 = vcvt.s32.f32 %v249
    %v266 = vcvt.s32.f32 %v250
    %v267 = vcvt.s32.f32 %v251
    %v268 = vcvt.s32.f32 %v252
    %v269 = vcvt.s32.f32 %v253
    %v270 = vcvt.s32.f32 %v254
    %v271 = vcvt.s32.f32 %v255
    %v272 = vcvt.s32.f32 %v256
    %v273 = vcvt.s32.f32 %v257
    %v274 = vcvt.s32.f32 %v258
    %v275 = vcvt.s32.f32 %v259
    %v276 = vcvt.s32.f32 %v260
    %v277 = vld [vmem:[#allocation2] sm:$0xff]
    %v278 = vld [vmem:[#allocation2 + $0x8] sm:$0xff]
    %279 = vmatprep.subr.mxu0 0.0
    %280 = vmatpush1.msra.mxu0 %v261
    %281 = vmatprep.subr.mxu0 0.0
    %282 = vmatpush1.msra.mxu0 %v262
    %283 = vmatprep.subr.mxu0 0.0
    %284 = vmatpush1.msra.mxu0 %v263
    %285 = vmatprep.subr.mxu0 0.0
    %286 = vmatpush1.msra.mxu0 %v264
    %287 = vmatprep.subr.mxu0 0.0
    %288 = vmatpush1.msra.mxu0 %v265
    %289 = vmatprep.subr.mxu0 0.0
    %290 = vmatpush1.msra.mxu0 %v266
    %291 = vmatprep.subr.mxu0 0.0
    %292 = vmatpush1.msra.mxu0 %v267
    %293 = vmatprep.subr.mxu0 0.0
    %294 = vmatpush1.msra.mxu0 %v268
    %295 = vmatprep.subr.mxu0 0.0
    %296 = vmatpush1.msra.mxu0 %v269
    %297 = vmatprep.subr.mxu0 0.0
    %298 = vmatpush1.msra.mxu0 %v270
    %299 = vmatprep.subr.mxu0 0.0
    %300 = vmatpush1.msra.mxu0 %v271
    %301 = vmatprep.subr.mxu0 0.0
    %302 = vmatpush1.msra.mxu0 %v272
    %303 = vmatprep.subr.mxu0 0.0
    %304 = vmatpush1.msra.mxu0 %v273
    %305 = vmatprep.subr.mxu0 0.0
    %306 = vmatpush1.msra.mxu0 %v274
    %307 = vmatprep.subr.mxu0 0.0
    %308 = vmatpush1.msra.mxu0 %v275
    %309 = vmatprep.subr.mxu0 0.0
    %310 = vmatpush1.msra.mxu0 %v276
    %311 = vmatprep.subr.mxu0 0.0
    %312 = vmatpush1.msra.mxu0 0.0
    %313 = vmatprep.subr.mxu0 0.0
    %314 = vmatpush1.msra.mxu0 0.0
    %315 = vmatprep.subr.mxu0 0.0
    %316 = vmatpush1.msra.mxu0 0.0
    %317 = vmatprep.subr.mxu0 0.0
    %318 = vmatpush1.msra.mxu0 0.0
    %319 = vmatprep.subr.mxu0 0.0
    %320 = vmatpush1.msra.mxu0 0.0
    %321 = vmatprep.subr.mxu0 0.0
    %322 = vmatpush1.msra.mxu0 0.0
    %323 = vmatprep.subr.mxu0 0.0
    %324 = vmatpush1.msra.mxu0 0.0
    %325 = vmatprep.subr.mxu0 0.0
    %326 = vmatpush1.msra.mxu0 0.0
    %327 = vmatprep.subr.mxu0 0.0
    %328 = vmatpush1.msra.mxu0 0.0
    %329 = vmatprep.subr.mxu0 0.0
    %330 = vmatpush1.msra.mxu0 0.0
    %331 = vmatprep.subr.mxu0 0.0
    %332 = vmatpush1.msra.mxu0 0.0
    %333 = vmatprep.subr.mxu0 0.0
    %334 = vmatpush1.msra.mxu0 0.0
    %335 = vmatprep.subr.mxu0 0.0
    %336 = vmatpush1.msra.mxu0 0.0
    %337 = vmatprep.subr.mxu0 0.0
    %338 = vmatpush1.msra.mxu0 0.0
    %339 = vmatprep.subr.mxu0 0.0
    %340 = vmatpush1.msra.mxu0 0.0
    %341 = vmatprep.subr.mxu0 0.0
    %342 = vmatpush1.msra.mxu0 0.0
    %343 = vmatprep.mubr.f32.mxu0 0.0
    %344 = vmatmul.mubr.f32.gmra.mrb[0].mxu0 %v156
    %v345 = vpop.f32.mrb[0].mxu0
    %v346 = vadd.f32 0.0, %v345
    %v347 = vpop.f32.mrb[0].mxu0
    %348 = vmatprep.mubr.f32.mxu0 0.0
    %349 = vmatmul.mubr.f32.gmra.mrb[0].mxu0 %v157
    %v350 = vpop.f32.mrb[0].mxu0
    %v351 = vadd.f32 0.0, %v350
    %v352 = vpop.f32.mrb[0].mxu0
    %353 = vdwg.mxu0
    %v354 = vadd.f32 %v277, %v346
    %v355 = vadd.f32 %v278, %v351
    %vm356 = vcmask 15360
    %357 = vst.msk [vmem:[#allocation2] sm:$0xff] %vm356, %v354
    %358 = vst.msk [vmem:[#allocation2 + $0x8] sm:$0xff] %vm356, %v355
    // Predicated region
    $region38: #{ac_discriminator_forward.3} parent=1 // pred_check
      %p359 = pneg %p35
    $region39: #{ac_discriminator_forward.3} parent=1 // pred_check_branch
      %361 = sbr.rel (%p359) target = $region41
    $region40: #{ac_discriminator_forward.3} parent=1 // pred_region
      %v362 = vld [vmem:[#allocation2] sm:$0xff]
      %v363 = vld [vmem:[#allocation2 + $0x8] sm:$0xff]
      %v364 = vmul.f32 %v362, 0.0625
      %v365 = vmul.f32 %v363, 0.0625
      %v366 = vld [vmem:[%s2] sm:$0x1]
      %v367 = vld [vmem:[#allocation3] sm:$0x1]
      %369 = vset.pattern.permute.xlu0 0
      %370 = vperm.xlu0 %369, %v367
      %v371 = vpop.permute.xlu0 %370
      %v373 = vlaneseq
      %v374 = vshrl.u32 %v373, 7
      %v375 = vsub.s32 0, %v374
      %v376 = vrot.slane %v371, %v375
      %vm377 = vcmask 130048
      %v379 = vsel %vm377, %v366, 0
      %381 = vmatprep.subr.mxu0 0.0
      %382 = vmatpush1.msra.mxu0 %v364
      %383 = vmatprep.subr.mxu0 0.0
      %384 = vmatpush1.msra.mxu0 %v365
      %385 = vmatprep.subr.mxu0 0.0
      %386 = vmatpush1.msra.mxu0 0.0
      %387 = vmatprep.subr.mxu0 0.0
      %388 = vmatpush1.msra.mxu0 0.0
      %389 = vmatprep.subr.mxu0 0.0
      %390 = vmatpush1.msra.mxu0 0.0
      %391 = vmatprep.subr.mxu0 0.0
      %392 = vmatpush1.msra.mxu0 0.0
      %393 = vmatprep.subr.mxu0 0.0
      %394 = vmatpush1.msra.mxu0 0.0
      %395 = vmatprep.subr.mxu0 0.0
      %396 = vmatpush1.msra.mxu0 0.0
      %397 = vmatprep.subr.mxu0 0.0
      %398 = vmatpush1.msra.mxu0 0.0
      %399 = vmatprep.subr.mxu0 0.0
      %400 = vmatpush1.msra.mxu0 0.0
      %401 = vmatprep.subr.mxu0 0.0
      %402 = vmatpush1.msra.mxu0 0.0
      %403 = vmatprep.subr.mxu0 0.0
      %404 = vmatpush1.msra.mxu0 0.0
      %405 = vmatprep.subr.mxu0 0.0
      %406 = vmatpush1.msra.mxu0 0.0
      %407 = vmatprep.subr.mxu0 0.0
      %408 = vmatpush1.msra.mxu0 0.0
      %409 = vmatprep.subr.mxu0 0.0
      %410 = vmatpush1.msra.mxu0 0.0
      %411 = vmatprep.subr.mxu0 0.0
      %412 = vmatpush1.msra.mxu0 0.0
      %413 = vmatprep.subr.mxu0 0.0
      %414 = vmatpush1.msra.mxu0 0.0
      %415 = vmatprep.subr.mxu0 0.0
      %416 = vmatpush1.msra.mxu0 0.0
      %417 = vmatprep.subr.mxu0 0.0
      %418 = vmatpush1.msra.mxu0 0.0
      %419 = vmatprep.subr.mxu0 0.0
      %420 = vmatpush1.msra.mxu0 0.0
      %421 = vmatprep.subr.mxu0 0.0
      %422 = vmatpush1.msra.mxu0 0.0
      %423 = vmatprep.subr.mxu0 0.0
      %424 = vmatpush1.msra.mxu0 0.0
      %425 = vmatprep.subr.mxu0 0.0
      %426 = vmatpush1.msra.mxu0 0.0
      %427 = vmatprep.subr.mxu0 0.0
      %428 = vmatpush1.msra.mxu0 0.0
      %429 = vmatprep.subr.mxu0 0.0
      %430 = vmatpush1.msra.mxu0 0.0
      %431 = vmatprep.subr.mxu0 0.0
      %432 = vmatpush1.msra.mxu0 0.0
      %433 = vmatprep.subr.mxu0 0.0
      %434 = vmatpush1.msra.mxu0 0.0
      %435 = vmatprep.subr.mxu0 0.0
      %436 = vmatpush1.msra.mxu0 0.0
      %437 = vmatprep.subr.mxu0 0.0
      %438 = vmatpush1.msra.mxu0 0.0
      %439 = vmatprep.subr.mxu0 0.0
      %440 = vmatpush1.msra.mxu0 0.0
      %441 = vmatprep.subr.mxu0 0.0
      %442 = vmatpush1.msra.mxu0 0.0
      %443 = vmatprep.subr.mxu0 0.0
      %444 = vmatpush1.msra.mxu0 0.0
      %445 = vmatprep.mubr.f32.mxu0 0.0
      %446 = vmatmul.mubr.f32.gmra.mrb[0].mxu0 %v379
      %v447 = vpop.f32.mrb[0].mxu0
      %v448 = vadd.f32 %v376, %v447
      %v449 = vpop.f32.mrb[0].mxu0
      %450 = vdwg.mxu0
      %v451 = vld [vmem:[%s4] sm:$0x7f]
      %v452 = vld [vmem:[%s5] sm:$0x7f]
      %454 = vset.pattern.permute.xlu0 0
      %455 = vperm.xlu0 %454, %v452
      %v456 = vpop.permute.xlu0 %455
      %v459 = vsel %vm377, %v451, 0
      %461 = vmatprep.subr.mxu0 0.0
      %462 = vmatpush1.msra.mxu0 %v364
      %463 = vmatprep.subr.mxu0 0.0
      %464 = vmatpush1.msra.mxu0 %v365
      %465 = vmatprep.subr.mxu0 0.0
      %466 = vmatpush1.msra.mxu0 0.0
      %467 = vmatprep.subr.mxu0 0.0
      %468 = vmatpush1.msra.mxu0 0.0
      %469 = vmatprep.subr.mxu0 0.0
      %470 = vmatpush1.msra.mxu0 0.0
      %471 = vmatprep.subr.mxu0 0.0
      %472 = vmatpush1.msra.mxu0 0.0
      %473 = vmatprep.subr.mxu0 0.0
      %474 = vmatpush1.msra.mxu0 0.0
      %475 = vmatprep.subr.mxu0 0.0
      %476 = vmatpush1.msra.mxu0 0.0
      %477 = vmatprep.subr.mxu0 0.0
      %478 = vmatpush1.msra.mxu0 0.0
      %479 = vmatprep.subr.mxu0 0.0
      %480 = vmatpush1.msra.mxu0 0.0
      %481 = vmatprep.subr.mxu0 0.0
      %482 = vmatpush1.msra.mxu0 0.0
      %483 = vmatprep.subr.mxu0 0.0
      %484 = vmatpush1.msra.mxu0 0.0
      %485 = vmatprep.subr.mxu0 0.0
      %486 = vmatpush1.msra.mxu0 0.0
      %487 = vmatprep.subr.mxu0 0.0
      %488 = vmatpush1.msra.mxu0 0.0
      %489 = vmatprep.subr.mxu0 0.0
      %490 = vmatpush1.msra.mxu0 0.0
      %491 = vmatprep.subr.mxu0 0.0
      %492 = vmatpush1.msra.mxu0 0.0
      %493 = vmatprep.subr.mxu0 0.0
      %494 = vmatpush1.msra.mxu0 0.0
      %495 = vmatprep.subr.mxu0 0.0
      %496 = vmatpush1.msra.mxu0 0.0
      %497 = vmatprep.subr.mxu0 0.0
      %498 = vmatpush1.msra.mxu0 0.0
      %499 = vmatprep.subr.mxu0 0.0
      %500 = vmatpush1.msra.mxu0 0.0
      %501 = vmatprep.subr.mxu0 0.0
      %502 = vmatpush1.msra.mxu0 0.0
      %503 = vmatprep.subr.mxu0 0.0
      %504 = vmatpush1.msra.mxu0 0.0
      %505 = vmatprep.subr.mxu0 0.0
      %506 = vmatpush1.msra.mxu0 0.0
      %507 = vmatprep.subr.mxu0 0.0
      %508 = vmatpush1.msra.mxu0 0.0
      %509 = vmatprep.subr.mxu0 0.0
      %510 = vmatpush1.msra.mxu0 0.0
      %511 = vmatprep.subr.mxu0 0.0
      %512 = vmatpush1.msra.mxu0 0.0
      %513 = vmatprep.subr.mxu0 0.0
      %514 = vmatpush1.msra.mxu0 0.0
      %515 = vmatprep.subr.mxu0 0.0
      %516 = vmatpush1.msra.mxu0 0.0
      %517 = vmatprep.subr.mxu0 0.0
      %518 = vmatpush1.msra.mxu0 0.0
      %519 = vmatprep.subr.mxu0 0.0
      %520 = vmatpush1.msra.mxu0 0.0
      %521 = vmatprep.subr.mxu0 0.0
      %522 = vmatpush1.msra.mxu0 0.0
      %523 = vmatprep.subr.mxu0 0.0
      %524 = vmatpush1.msra.mxu0 0.0
      %525 = vmatprep.mubr.f32.mxu0 0.0
      %526 = vmatmul.mubr.f32.gmra.mrb[0].mxu0 %v459
      %v527 = vpop.f32.mrb[0].mxu0
      %v528 = vadd.f32 %v456, %v527
      %v529 = vpop.f32.mrb[0].mxu0
      %530 = vdwg.mxu0
      %vm531 = vcmask 8192
      %532 = vst.msk [vmem:[#allocation4] sm:$0x1] %vm531, %v448
      %vm533 = vcmask 14336
      %v534 = vsel %vm533, %v528, -inf
      %v535 = vrot.slane %v534, 4
      %v536 = vmax.f32 %v534, %v535
      %v537 = vrot.slane %v536, 2
      %v538 = vmax.f32 %v536, %v537
      %v539 = vrot.slane %v538, 1
      %v540 = vmax.f32 %v538, %v539
      %v541 = vsub.f32 %v528, %v540
      %v542 = vmul.f32 %v541, 1.442695
      %v543 = vpow.pop %v542
      %v544 = vsel %vm533, %v543, 0.0
      %v545 = vrot.slane %v544, 4
      %v546 = vadd.f32 %v544, %v545
      %v547 = vrot.slane %v546, 2
      %v548 = vadd.f32 %v546, %v547
      %v549 = vrot.slane %v548, 1
      %v550 = vadd.f32 %v548, %v549
      %v551 = vlog2.pop %v550
      %v552 = vmul.f32 %v551, 0.6931472
      %v553 = vadd.f32 %v552, %v540
      %v554 = vsub.f32 %v528, %v553
      %v555 = vld [vmem:[%s6] sm:$0x7f]
      %v556 = vmul.f32 %v555, %v554
      %v557 = vsel %vm533, %v556, 0.0
      %v558 = vrot.slane %v557, 4
      %v559 = vadd.f32 %v557, %v558
      %v560 = vrot.slane %v559, 2
      %v561 = vadd.f32 %v559, %v560
      %v562 = vrot.slane %v561, 1
      %v563 = vadd.f32 %v561, %v562
      %v564 = vsub.f32 0.0, %v563
      %v565 = vsel %vm356, %v564, 0.0
      %566 = vadd.xlane.f32.xlu0 %v565
      %v567 = vpop.xlane.xlu0 %566
      %v568 = vrcp.pop 2.0
      %v569 = vmul.f32 %v567, %v568
      %vm570 = vcmask 0
      %571 = vst.msk [vmem:[#allocation6] sm:$0x1] %vm570, %v569
    $region41: #{ac_discriminator_forward.3} parent=1 // pred_fallthru
      _
    // Predicated region
    $region42: #{ac_discriminator_forward.3} parent=1 // pred_check
      _
    $region43: #{ac_discriminator_forward.3} parent=1 // pred_check_branch
      %573 = sbr.rel (0) target = $region45
    $region44: #{ac_discriminator_forward.3} parent=1 // pred_region
      %s575 = ssub.s32 16, 16
      %576 = vsyncadd [#allocation5], %s575
      %s578 = sshll.u32 [#allocation4], 4
      %s579 = int_to_ptr.vmem [resolvable:$true] %s578
      %581 = dma.vmem_to_hbm [thread:$0]  %s579, 16, %s8, [#allocation5]
    $region45: #{ac_discriminator_forward.3} parent=1 // pred_fallthru
      _
    // Predicated region
    $region46: #{ac_discriminator_forward.3} parent=1 // pred_check
      _
    $region47: #{ac_discriminator_forward.3} parent=1 // pred_check_branch
      %583 = sbr.rel (0) target = $region49
    $region48: #{ac_discriminator_forward.3} parent=1 // pred_region
      %s585 = ssub.s32 16, 16
      %586 = vsyncadd [#allocation7], %s585
      %s588 = sshll.u32 [#allocation6], 4
      %s589 = int_to_ptr.vmem [resolvable:$true] %s588
      %591 = dma.vmem_to_hbm [thread:$0]  %s589, 16, %s9, [#allocation7]
    $region49: #{ac_discriminator_forward.3} parent=1 // pred_fallthru
      _
    // Predicated region
    $region50: #{ac_discriminator_forward.3} parent=1 // pred_check
      _
    $region51: #{ac_discriminator_forward.3} parent=1 // pred_check_branch
      %593 = sbr.rel (0) target = $region53
    $region52: #{ac_discriminator_forward.3} parent=1 // pred_region
      %594 = dma.done [#allocation5], 16
    $region53: #{ac_discriminator_forward.3} parent=1 // pred_fallthru
      _
    // Predicated region
    $region54: #{ac_discriminator_forward.3} parent=1 // pred_check
      _
    $region55: #{ac_discriminator_forward.3} parent=1 // pred_check_branch
      %596 = sbr.rel (0) target = $region57
    $region56: #{ac_discriminator_forward.3} parent=1 // pred_region
      %597 = dma.done [#allocation7], 16
    $region57: #{ac_discriminator_forward.3} parent=1 // pred_fallthru
      _
    %598 = vsyncpa [#allocation5], 1
    %599 = vsyncpa [#allocation7], 1

</llo_original>
